<compile_context>
chip_gen: v5e
topology: v5e:2x2
jax: 0.10.0
libtpu: 0.0.40
codegen_flags: <defaults>
</compile_context>

<pallas_src>
import jax
import jax.numpy as jnp
from jax import lax
from jax.experimental import pallas as pl
from jax.experimental.pallas import tpu as pltpu


def _lstm_kernel(x_ref, p_ref, out_ref):
    """Full LSTM recurrence + final linear projection in one invocation.

    x_ref : (seq_len, 1)   input sequence (input_size == 1)
    p_ref : (H+4, 4H)      packed params:
              rows [0:H)   = W_hh^T               (H, 4H)
              row  H       = w_ih^T               (1, 4H)
              row  H+1     = b_ih + b_hh          (1, 4H)
              row  H+2     = w_lin padded to 4H   (first H lanes)
              row  H+3     = b_lin                (lane 0)
    out_ref : (1, 1)       predictions[-1]
    """
    seq_len = x_ref.shape[0]
    H = p_ref.shape[0] - 4
    assert p_ref.shape[1] == 4 * H

    # One-time loads / casts (off the per-step critical chain).
    w_hh_bf = p_ref[0:H, :].astype(jnp.bfloat16)          # (H, 4H) bf16, MXU-native
    w_ih = p_ref[H:H + 1, :]                               # (1, 4H)
    b = p_ref[H + 1:H + 2, :]                              # (1, 4H)
    w_lin = p_ref[H + 2:H + 3, 0:H]                        # (1, H)
    b_lin = p_ref[H + 3:H + 4, 0:1]                        # (1, 1)

    # Hoisted input projection + bias: (seq_len,1)*(1,4H)+(1,4H) -> (seq_len,4H).
    xw = x_ref[...] * w_ih + b

    h = jnp.zeros((1, H), jnp.float32)
    c = jnp.zeros((1, H), jnp.float32)

    def step(xw_t, h, c):
        # Recurrent matmul: bf16 operands, f32 accumulation (one MXU pass).
        gates = xw_t + jnp.dot(h.astype(jnp.bfloat16), w_hh_bf,
                               preferred_element_type=jnp.float32)   # (1, 4H) f32
        # sigmoid(x) = 0.5*tanh(x/2) + 0.5  -> one EUP push; independent of the
        # tanh(gates) push, so the two pipeline through the EUP FIFO.
        sg = 0.5 * jnp.tanh(0.5 * gates) + 0.5             # (1, 4H)
        th = jnp.tanh(gates)                                # (1, 4H)
        i = sg[:, 0 * H:1 * H]
        f = sg[:, 1 * H:2 * H]
        g = th[:, 2 * H:3 * H]
        o = sg[:, 3 * H:4 * H]
        c_new = f * c + i * g
        h_new = o * jnp.tanh(c_new)
        return h_new, c_new

    if seq_len <= 32:
        # Fully unrolled: static trip count, no loop back-edges on the chain.
        for t in range(seq_len):
            h, c = step(xw[t:t + 1, :], h, c)
    else:
        def body(t, carry):
            h, c = carry
            xw_t = lax.dynamic_slice_in_dim(xw, t, 1, axis=0)
            return step(xw_t, h, c)
        h, c = lax.fori_loop(0, seq_len, body, (h, c), unroll=8)

    # Final linear layer (output_size == 1): dot product along the lane dim.
    out_ref[...] = jnp.sum(h * w_lin, axis=-1, keepdims=True) + b_lin


def prepare_params(w_ih, w_hh, b_ih, b_hh, w_lin, b_lin, hidden_size):
    """One-time host-side packing of all parameters into a single (H+4, 4H) tensor.

    Called once and cached by the user; keeps the per-call jitted forward free of
    transpose/reshape HLO ops and collapses six tiny input DMAs into one.
    """
    H = hidden_size
    assert w_ih.shape == (4 * H, 1), "input_size must be 1 (module default)"
    p = jnp.zeros((H + 4, 4 * H), jnp.float32)
    p = p.at[0:H, :].set(jnp.transpose(w_hh).astype(jnp.float32))          # W_hh^T
    p = p.at[H, :].set(jnp.reshape(w_ih, (4 * H,)).astype(jnp.float32))    # w_ih^T
    p = p.at[H + 1, :].set((b_ih + b_hh).astype(jnp.float32))              # bias
    p = p.at[H + 2, 0:H].set(jnp.reshape(w_lin, (H,)).astype(jnp.float32))  # linear w
    p = p.at[H + 3, 0].set(b_lin.reshape(()).astype(jnp.float32))          # linear b
    return p


@jax.jit
def lstm_forward(input_seq, packed_params):
    """Replicates LSTM.forward: returns predictions[-1] of shape (output_size,)."""
    seq_len = input_seq.shape[0]
    x2d = jnp.reshape(input_seq, (seq_len, -1)).astype(jnp.float32)  # view(len, 1, -1)

    vmem_spec = pl.BlockSpec(memory_space=pltpu.MemorySpace.VMEM)
    out = pl.pallas_call(
        _lstm_kernel,
        out_shape=jax.ShapeDtypeStruct((1, 1), jnp.float32),
        in_specs=[vmem_spec, vmem_spec],
        out_specs=vmem_spec,
    )(x2d, packed_params)
    return out.reshape(-1)                                  # (output_size,)


def lstm_reference(input_seq, w_ih, w_hh, b_ih, b_hh, w_lin, b_lin, hidden_size,
                   matmul_dtype=jnp.float32):
    """Pure-JAX reference mirroring torch nn.LSTM + nn.Linear semantics.

    matmul_dtype lets us build a reference whose recurrent matmul uses the same
    bf16 operand precision as the kernel (tight check) or full f32 (loose check).
    """
    H = hidden_size
    x = jnp.reshape(input_seq, (input_seq.shape[0], -1)).astype(jnp.float32)
    w_hh_c = w_hh.astype(matmul_dtype)

    def step(carry, x_t):
        h, c = carry
        gates = (w_ih @ x_t + b_ih + b_hh
                 + jnp.dot(w_hh_c, h.astype(matmul_dtype),
                           preferred_element_type=jnp.float32))     # (4H,)
        i = jax.nn.sigmoid(gates[0 * H:1 * H])
        f = jax.nn.sigmoid(gates[1 * H:2 * H])
        g = jnp.tanh(gates[2 * H:3 * H])
        o = jax.nn.sigmoid(gates[3 * H:4 * H])
        c = f * c + i * g
        h = o * jnp.tanh(c)
        return (h, c), None

    (h, _), _ = lax.scan(step, (jnp.zeros(H), jnp.zeros(H)), x)
    return w_lin @ h + b_lin                                # (output_size,)


if __name__ == "__main__":
    # Small shapes consistent with the module: input_size=1, output_size=1.
    hidden_size = 32
    seq_len = 8
    input_size = 1
    output_size = 1

    key = jax.random.PRNGKey(0)
    k = jax.random.split(key, 7)
    stdv = 1.0 / float(jnp.sqrt(hidden_size))

    # Deterministic synthetic parameters (torch-style uniform(-1/sqrt(H), 1/sqrt(H))).
    w_ih = jax.random.uniform(k[0], (4 * hidden_size, input_size), jnp.float32, -stdv, stdv)
    w_hh = jax.random.uniform(k[1], (4 * hidden_size, hidden_size), jnp.float32, -stdv, stdv)
    b_ih = jax.random.uniform(k[2], (4 * hidden_size,), jnp.float32, -stdv, stdv)
    b_hh = jax.random.uniform(k[3], (4 * hidden_size,), jnp.float32, -stdv, stdv)
    w_lin = jax.random.uniform(k[4], (output_size, hidden_size), jnp.float32, -stdv, stdv)
    b_lin = jax.random.uniform(k[5], (output_size,), jnp.float32, -stdv, stdv)

    # input_seq is a 1-D sequence, as in the original training script.
    input_seq = jax.random.normal(k[6], (seq_len,), jnp.float32)

    # One-time parameter packing (cached across forward calls).
    packed = prepare_params(w_ih, w_hh, b_ih, b_hh, w_lin, b_lin, hidden_size)
    packed = jax.block_until_ready(packed)

    pred = lstm_forward(input_seq, packed)
    pred = jax.block_until_ready(pred)
    assert pred.shape == (output_size,)

    # Tight check vs. a reference using the same bf16-operand recurrent matmul.
    ref_matched = lstm_reference(input_seq, w_ih, w_hh, b_ih, b_hh, w_lin, b_lin,
                                 hidden_size, matmul_dtype=jnp.bfloat16)
    assert jnp.allclose(pred, ref_matched, atol=1e-3, rtol=1e-3), (pred, ref_matched)

    # Loose sanity check vs. the full-f32 reference (bf16 MXU operands only
    # perturb the result at the ~1e-3 level for these magnitudes).
    ref_f32 = lstm_reference(input_seq, w_ih, w_hh, b_ih, b_hh, w_lin, b_lin,
                             hidden_size, matmul_dtype=jnp.float32)
    assert jnp.allclose(pred, ref_f32, atol=5e-2, rtol=5e-2), (pred, ref_f32)

    print("KERNEL_OK")
</pallas_src>

<mosaic_0001>
module attributes {stable_mosaic.version = 11 : i64} {
  func.func @_lstm_kernel(%arg0: memref<8x1xf32, #tpu.memory_space<vmem>>, %arg1: memref<36x128xf32, #tpu.memory_space<vmem>>, %arg2: memref<1x1xf32, #tpu.memory_space<vmem>>) attributes {dimension_semantics = [], scalar_prefetch = 0 : i64, scratch_operands = 0 : i64, tpu.core_type = #tpu.core_type<tc>} {
    %c0 = arith.constant 0 : index
    %c0_0 = arith.constant 0 : index
    %0 = vector.load %arg1[%c0, %c0_0] : memref<36x128xf32, #tpu.memory_space<vmem>>, vector<32x128xf32>
    %1 = arith.truncf %0 : vector<32x128xf32> to vector<32x128xbf16>
    %c32 = arith.constant 32 : index
    %c0_1 = arith.constant 0 : index
    %2 = vector.load %arg1[%c32, %c0_1] : memref<36x128xf32, #tpu.memory_space<vmem>>, vector<1x128xf32>
    %c33 = arith.constant 33 : index
    %c0_2 = arith.constant 0 : index
    %3 = vector.load %arg1[%c33, %c0_2] : memref<36x128xf32, #tpu.memory_space<vmem>>, vector<1x128xf32>
    %c34 = arith.constant 34 : index
    %c0_3 = arith.constant 0 : index
    %4 = vector.load %arg1[%c34, %c0_3] : memref<36x128xf32, #tpu.memory_space<vmem>>, vector<1x32xf32>
    %c35 = arith.constant 35 : index
    %c0_4 = arith.constant 0 : index
    %5 = vector.load %arg1[%c35, %c0_4] : memref<36x128xf32, #tpu.memory_space<vmem>>, vector<1x1xf32>
    %c0_5 = arith.constant 0 : index
    %c0_6 = arith.constant 0 : index
    %6 = vector.load %arg0[%c0_5, %c0_6] : memref<8x1xf32, #tpu.memory_space<vmem>>, vector<8x1xf32>
    %7 = vector.broadcast %6 : vector<8x1xf32> to vector<8x128xf32>
    %8 = vector.broadcast %2 : vector<1x128xf32> to vector<8x128xf32>
    %9 = arith.mulf %7, %8 : vector<8x128xf32>
    %10 = vector.broadcast %3 : vector<1x128xf32> to vector<8x128xf32>
    %11 = arith.addf %9, %10 : vector<8x128xf32>
    %cst = arith.constant 0.000000e+00 : f32
    %12 = vector.broadcast %cst : f32 to vector<1x32xf32>
    %cst_7 = arith.constant 0.000000e+00 : f32
    %13 = vector.broadcast %cst_7 : f32 to vector<1x32xf32>
    %14 = vector.extract_strided_slice %11 {offsets = [0, 0], sizes = [1, 128], strides = [1, 1]} : vector<8x128xf32> to vector<1x128xf32>
    %15 = arith.truncf %12 : vector<1x32xf32> to vector<1x32xbf16>
    %cst_8 = arith.constant dense<0.000000e+00> : vector<1x128xf32>
    %16 = tpu.matmul %15, %1, %cst_8 {dimension_numbers = #tpu.dot_dimension_numbers<[1], [0], [0], [1], [0, 0, 1, 1], [], []>} : vector<1x32xbf16>, vector<32x128xbf16>, vector<1x128xf32> -> vector<1x128xf32>
    %17 = arith.addf %14, %16 : vector<1x128xf32>
    %cst_9 = arith.constant 5.000000e-01 : f32
    %18 = vector.broadcast %cst_9 : f32 to vector<1x128xf32>
    %19 = arith.mulf %18, %17 : vector<1x128xf32>
    %20 = math.tanh %19 : vector<1x128xf32>
    %cst_10 = arith.constant 5.000000e-01 : f32
    %21 = vector.broadcast %cst_10 : f32 to vector<1x128xf32>
    %22 = arith.mulf %21, %20 : vector<1x128xf32>
    %cst_11 = arith.constant 5.000000e-01 : f32
    %23 = vector.broadcast %cst_11 : f32 to vector<1x128xf32>
    %24 = arith.addf %22, %23 : vector<1x128xf32>
    %25 = math.tanh %17 : vector<1x128xf32>
    %26 = vector.extract_strided_slice %24 {offsets = [0, 0], sizes = [1, 32], strides = [1, 1]} : vector<1x128xf32> to vector<1x32xf32>
    %27 = vector.extract_strided_slice %24 {offsets = [0, 32], sizes = [1, 32], strides = [1, 1]} : vector<1x128xf32> to vector<1x32xf32>
    %28 = vector.extract_strided_slice %25 {offsets = [0, 64], sizes = [1, 32], strides = [1, 1]} : vector<1x128xf32> to vector<1x32xf32>
    %29 = vector.extract_strided_slice %24 {offsets = [0, 96], sizes = [1, 32], strides = [1, 1]} : vector<1x128xf32> to vector<1x32xf32>
    %30 = arith.mulf %27, %13 : vector<1x32xf32>
    %31 = arith.mulf %26, %28 : vector<1x32xf32>
    %32 = arith.addf %30, %31 : vector<1x32xf32>
    %33 = math.tanh %32 : vector<1x32xf32>
    %34 = arith.mulf %29, %33 : vector<1x32xf32>
    %35 = vector.extract_strided_slice %11 {offsets = [1, 0], sizes = [1, 128], strides = [1, 1]} : vector<8x128xf32> to vector<1x128xf32>
    %36 = arith.truncf %34 : vector<1x32xf32> to vector<1x32xbf16>
    %cst_12 = arith.constant dense<0.000000e+00> : vector<1x128xf32>
    %37 = tpu.matmul %36, %1, %cst_12 {dimension_numbers = #tpu.dot_dimension_numbers<[1], [0], [0], [1], [0, 0, 1, 1], [], []>} : vector<1x32xbf16>, vector<32x128xbf16>, vector<1x128xf32> -> vector<1x128xf32>
    %38 = arith.addf %35, %37 : vector<1x128xf32>
    %cst_13 = arith.constant 5.000000e-01 : f32
    %39 = vector.broadcast %cst_13 : f32 to vector<1x128xf32>
    %40 = arith.mulf %39, %38 : vector<1x128xf32>
    %41 = math.tanh %40 : vector<1x128xf32>
    %cst_14 = arith.constant 5.000000e-01 : f32
    %42 = vector.broadcast %cst_14 : f32 to vector<1x128xf32>
    %43 = arith.mulf %42, %41 : vector<1x128xf32>
    %cst_15 = arith.constant 5.000000e-01 : f32
    %44 = vector.broadcast %cst_15 : f32 to vector<1x128xf32>
    %45 = arith.addf %43, %44 : vector<1x128xf32>
    %46 = math.tanh %38 : vector<1x128xf32>
    %47 = vector.extract_strided_slice %45 {offsets = [0, 0], sizes = [1, 32], strides = [1, 1]} : vector<1x128xf32> to vector<1x32xf32>
    %48 = vector.extract_strided_slice %45 {offsets = [0, 32], sizes = [1, 32], strides = [1, 1]} : vector<1x128xf32> to vector<1x32xf32>
    %49 = vector.extract_strided_slice %46 {offsets = [0, 64], sizes = [1, 32], strides = [1, 1]} : vector<1x128xf32> to vector<1x32xf32>
    %50 = vector.extract_strided_slice %45 {offsets = [0, 96], sizes = [1, 32], strides = [1, 1]} : vector<1x128xf32> to vector<1x32xf32>
    %51 = arith.mulf %48, %32 : vector<1x32xf32>
    %52 = arith.mulf %47, %49 : vector<1x32xf32>
    %53 = arith.addf %51, %52 : vector<1x32xf32>
    %54 = math.tanh %53 : vector<1x32xf32>
    %55 = arith.mulf %50, %54 : vector<1x32xf32>
    %56 = vector.extract_strided_slice %11 {offsets = [2, 0], sizes = [1, 128], strides = [1, 1]} : vector<8x128xf32> to vector<1x128xf32>
    %57 = arith.truncf %55 : vector<1x32xf32> to vector<1x32xbf16>
    %cst_16 = arith.constant dense<0.000000e+00> : vector<1x128xf32>
    %58 = tpu.matmul %57, %1, %cst_16 {dimension_numbers = #tpu.dot_dimension_numbers<[1], [0], [0], [1], [0, 0, 1, 1], [], []>} : vector<1x32xbf16>, vector<32x128xbf16>, vector<1x128xf32> -> vector<1x128xf32>
    %59 = arith.addf %56, %58 : vector<1x128xf32>
    %cst_17 = arith.constant 5.000000e-01 : f32
    %60 = vector.broadcast %cst_17 : f32 to vector<1x128xf32>
    %61 = arith.mulf %60, %59 : vector<1x128xf32>
    %62 = math.tanh %61 : vector<1x128xf32>
    %cst_18 = arith.constant 5.000000e-01 : f32
    %63 = vector.broadcast %cst_18 : f32 to vector<1x128xf32>
    %64 = arith.mulf %63, %62 : vector<1x128xf32>
    %cst_19 = arith.constant 5.000000e-01 : f32
    %65 = vector.broadcast %cst_19 : f32 to vector<1x128xf32>
    %66 = arith.addf %64, %65 : vector<1x128xf32>
    %67 = math.tanh %59 : vector<1x128xf32>
    %68 = vector.extract_strided_slice %66 {offsets = [0, 0], sizes = [1, 32], strides = [1, 1]} : vector<1x128xf32> to vector<1x32xf32>
    %69 = vector.extract_strided_slice %66 {offsets = [0, 32], sizes = [1, 32], strides = [1, 1]} : vector<1x128xf32> to vector<1x32xf32>
    %70 = vector.extract_strided_slice %67 {offsets = [0, 64], sizes = [1, 32], strides = [1, 1]} : vector<1x128xf32> to vector<1x32xf32>
    %71 = vector.extract_strided_slice %66 {offsets = [0, 96], sizes = [1, 32], strides = [1, 1]} : vector<1x128xf32> to vector<1x32xf32>
    %72 = arith.mulf %69, %53 : vector<1x32xf32>
    %73 = arith.mulf %68, %70 : vector<1x32xf32>
    %74 = arith.addf %72, %73 : vector<1x32xf32>
    %75 = math.tanh %74 : vector<1x32xf32>
    %76 = arith.mulf %71, %75 : vector<1x32xf32>
    %77 = vector.extract_strided_slice %11 {offsets = [3, 0], sizes = [1, 128], strides = [1, 1]} : vector<8x128xf32> to vector<1x128xf32>
    %78 = arith.truncf %76 : vector<1x32xf32> to vector<1x32xbf16>
    %cst_20 = arith.constant dense<0.000000e+00> : vector<1x128xf32>
    %79 = tpu.matmul %78, %1, %cst_20 {dimension_numbers = #tpu.dot_dimension_numbers<[1], [0], [0], [1], [0, 0, 1, 1], [], []>} : vector<1x32xbf16>, vector<32x128xbf16>, vector<1x128xf32> -> vector<1x128xf32>
    %80 = arith.addf %77, %79 : vector<1x128xf32>
    %cst_21 = arith.constant 5.000000e-01 : f32
    %81 = vector.broadcast %cst_21 : f32 to vector<1x128xf32>
    %82 = arith.mulf %81, %80 : vector<1x128xf32>
    %83 = math.tanh %82 : vector<1x128xf32>
    %cst_22 = arith.constant 5.000000e-01 : f32
    %84 = vector.broadcast %cst_22 : f32 to vector<1x128xf32>
    %85 = arith.mulf %84, %83 : vector<1x128xf32>
    %cst_23 = arith.constant 5.000000e-01 : f32
    %86 = vector.broadcast %cst_23 : f32 to vector<1x128xf32>
    %87 = arith.addf %85, %86 : vector<1x128xf32>
    %88 = math.tanh %80 : vector<1x128xf32>
    %89 = vector.extract_strided_slice %87 {offsets = [0, 0], sizes = [1, 32], strides = [1, 1]} : vector<1x128xf32> to vector<1x32xf32>
    %90 = vector.extract_strided_slice %87 {offsets = [0, 32], sizes = [1, 32], strides = [1, 1]} : vector<1x128xf32> to vector<1x32xf32>
    %91 = vector.extract_strided_slice %88 {offsets = [0, 64], sizes = [1, 32], strides = [1, 1]} : vector<1x128xf32> to vector<1x32xf32>
    %92 = vector.extract_strided_slice %87 {offsets = [0, 96], sizes = [1, 32], strides = [1, 1]} : vector<1x128xf32> to vector<1x32xf32>
    %93 = arith.mulf %90, %74 : vector<1x32xf32>
    %94 = arith.mulf %89, %91 : vector<1x32xf32>
    %95 = arith.addf %93, %94 : vector<1x32xf32>
    %96 = math.tanh %95 : vector<1x32xf32>
    %97 = arith.mulf %92, %96 : vector<1x32xf32>
    %98 = vector.extract_strided_slice %11 {offsets = [4, 0], sizes = [1, 128], strides = [1, 1]} : vector<8x128xf32> to vector<1x128xf32>
    %99 = arith.truncf %97 : vector<1x32xf32> to vector<1x32xbf16>
    %cst_24 = arith.constant dense<0.000000e+00> : vector<1x128xf32>
    %100 = tpu.matmul %99, %1, %cst_24 {dimension_numbers = #tpu.dot_dimension_numbers<[1], [0], [0], [1], [0, 0, 1, 1], [], []>} : vector<1x32xbf16>, vector<32x128xbf16>, vector<1x128xf32> -> vector<1x128xf32>
    %101 = arith.addf %98, %100 : vector<1x128xf32>
    %cst_25 = arith.constant 5.000000e-01 : f32
    %102 = vector.broadcast %cst_25 : f32 to vector<1x128xf32>
    %103 = arith.mulf %102, %101 : vector<1x128xf32>
    %104 = math.tanh %103 : vector<1x128xf32>
    %cst_26 = arith.constant 5.000000e-01 : f32
    %105 = vector.broadcast %cst_26 : f32 to vector<1x128xf32>
    %106 = arith.mulf %105, %104 : vector<1x128xf32>
    %cst_27 = arith.constant 5.000000e-01 : f32
    %107 = vector.broadcast %cst_27 : f32 to vector<1x128xf32>
    %108 = arith.addf %106, %107 : vector<1x128xf32>
    %109 = math.tanh %101 : vector<1x128xf32>
    %110 = vector.extract_strided_slice %108 {offsets = [0, 0], sizes = [1, 32], strides = [1, 1]} : vector<1x128xf32> to vector<1x32xf32>
    %111 = vector.extract_strided_slice %108 {offsets = [0, 32], sizes = [1, 32], strides = [1, 1]} : vector<1x128xf32> to vector<1x32xf32>
    %112 = vector.extract_strided_slice %109 {offsets = [0, 64], sizes = [1, 32], strides = [1, 1]} : vector<1x128xf32> to vector<1x32xf32>
    %113 = vector.extract_strided_slice %108 {offsets = [0, 96], sizes = [1, 32], strides = [1, 1]} : vector<1x128xf32> to vector<1x32xf32>
    %114 = arith.mulf %111, %95 : vector<1x32xf32>
    %115 = arith.mulf %110, %112 : vector<1x32xf32>
    %116 = arith.addf %114, %115 : vector<1x32xf32>
    %117 = math.tanh %116 : vector<1x32xf32>
    %118 = arith.mulf %113, %117 : vector<1x32xf32>
    %119 = vector.extract_strided_slice %11 {offsets = [5, 0], sizes = [1, 128], strides = [1, 1]} : vector<8x128xf32> to vector<1x128xf32>
    %120 = arith.truncf %118 : vector<1x32xf32> to vector<1x32xbf16>
    %cst_28 = arith.constant dense<0.000000e+00> : vector<1x128xf32>
    %121 = tpu.matmul %120, %1, %cst_28 {dimension_numbers = #tpu.dot_dimension_numbers<[1], [0], [0], [1], [0, 0, 1, 1], [], []>} : vector<1x32xbf16>, vector<32x128xbf16>, vector<1x128xf32> -> vector<1x128xf32>
    %122 = arith.addf %119, %121 : vector<1x128xf32>
    %cst_29 = arith.constant 5.000000e-01 : f32
    %123 = vector.broadcast %cst_29 : f32 to vector<1x128xf32>
    %124 = arith.mulf %123, %122 : vector<1x128xf32>
    %125 = math.tanh %124 : vector<1x128xf32>
    %cst_30 = arith.constant 5.000000e-01 : f32
    %126 = vector.broadcast %cst_30 : f32 to vector<1x128xf32>
    %127 = arith.mulf %126, %125 : vector<1x128xf32>
    %cst_31 = arith.constant 5.000000e-01 : f32
    %128 = vector.broadcast %cst_31 : f32 to vector<1x128xf32>
    %129 = arith.addf %127, %128 : vector<1x128xf32>
    %130 = math.tanh %122 : vector<1x128xf32>
    %131 = vector.extract_strided_slice %129 {offsets = [0, 0], sizes = [1, 32], strides = [1, 1]} : vector<1x128xf32> to vector<1x32xf32>
    %132 = vector.extract_strided_slice %129 {offsets = [0, 32], sizes = [1, 32], strides = [1, 1]} : vector<1x128xf32> to vector<1x32xf32>
    %133 = vector.extract_strided_slice %130 {offsets = [0, 64], sizes = [1, 32], strides = [1, 1]} : vector<1x128xf32> to vector<1x32xf32>
    %134 = vector.extract_strided_slice %129 {offsets = [0, 96], sizes = [1, 32], strides = [1, 1]} : vector<1x128xf32> to vector<1x32xf32>
    %135 = arith.mulf %132, %116 : vector<1x32xf32>
    %136 = arith.mulf %131, %133 : vector<1x32xf32>
    %137 = arith.addf %135, %136 : vector<1x32xf32>
    %138 = math.tanh %137 : vector<1x32xf32>
    %139 = arith.mulf %134, %138 : vector<1x32xf32>
    %140 = vector.extract_strided_slice %11 {offsets = [6, 0], sizes = [1, 128], strides = [1, 1]} : vector<8x128xf32> to vector<1x128xf32>
    %141 = arith.truncf %139 : vector<1x32xf32> to vector<1x32xbf16>
    %cst_32 = arith.constant dense<0.000000e+00> : vector<1x128xf32>
    %142 = tpu.matmul %141, %1, %cst_32 {dimension_numbers = #tpu.dot_dimension_numbers<[1], [0], [0], [1], [0, 0, 1, 1], [], []>} : vector<1x32xbf16>, vector<32x128xbf16>, vector<1x128xf32> -> vector<1x128xf32>
    %143 = arith.addf %140, %142 : vector<1x128xf32>
    %cst_33 = arith.constant 5.000000e-01 : f32
    %144 = vector.broadcast %cst_33 : f32 to vector<1x128xf32>
    %145 = arith.mulf %144, %143 : vector<1x128xf32>
    %146 = math.tanh %145 : vector<1x128xf32>
    %cst_34 = arith.constant 5.000000e-01 : f32
    %147 = vector.broadcast %cst_34 : f32 to vector<1x128xf32>
    %148 = arith.mulf %147, %146 : vector<1x128xf32>
    %cst_35 = arith.constant 5.000000e-01 : f32
    %149 = vector.broadcast %cst_35 : f32 to vector<1x128xf32>
    %150 = arith.addf %148, %149 : vector<1x128xf32>
    %151 = math.tanh %143 : vector<1x128xf32>
    %152 = vector.extract_strided_slice %150 {offsets = [0, 0], sizes = [1, 32], strides = [1, 1]} : vector<1x128xf32> to vector<1x32xf32>
    %153 = vector.extract_strided_slice %150 {offsets = [0, 32], sizes = [1, 32], strides = [1, 1]} : vector<1x128xf32> to vector<1x32xf32>
    %154 = vector.extract_strided_slice %151 {offsets = [0, 64], sizes = [1, 32], strides = [1, 1]} : vector<1x128xf32> to vector<1x32xf32>
    %155 = vector.extract_strided_slice %150 {offsets = [0, 96], sizes = [1, 32], strides = [1, 1]} : vector<1x128xf32> to vector<1x32xf32>
    %156 = arith.mulf %153, %137 : vector<1x32xf32>
    %157 = arith.mulf %152, %154 : vector<1x32xf32>
    %158 = arith.addf %156, %157 : vector<1x32xf32>
    %159 = math.tanh %158 : vector<1x32xf32>
    %160 = arith.mulf %155, %159 : vector<1x32xf32>
    %161 = vector.extract_strided_slice %11 {offsets = [7, 0], sizes = [1, 128], strides = [1, 1]} : vector<8x128xf32> to vector<1x128xf32>
    %162 = arith.truncf %160 : vector<1x32xf32> to vector<1x32xbf16>
    %cst_36 = arith.constant dense<0.000000e+00> : vector<1x128xf32>
    %163 = tpu.matmul %162, %1, %cst_36 {dimension_numbers = #tpu.dot_dimension_numbers<[1], [0], [0], [1], [0, 0, 1, 1], [], []>} : vector<1x32xbf16>, vector<32x128xbf16>, vector<1x128xf32> -> vector<1x128xf32>
    %164 = arith.addf %161, %163 : vector<1x128xf32>
    %cst_37 = arith.constant 5.000000e-01 : f32
    %165 = vector.broadcast %cst_37 : f32 to vector<1x128xf32>
    %166 = arith.mulf %165, %164 : vector<1x128xf32>
    %167 = math.tanh %166 : vector<1x128xf32>
    %cst_38 = arith.constant 5.000000e-01 : f32
    %168 = vector.broadcast %cst_38 : f32 to vector<1x128xf32>
    %169 = arith.mulf %168, %167 : vector<1x128xf32>
    %cst_39 = arith.constant 5.000000e-01 : f32
    %170 = vector.broadcast %cst_39 : f32 to vector<1x128xf32>
    %171 = arith.addf %169, %170 : vector<1x128xf32>
    %172 = math.tanh %164 : vector<1x128xf32>
    %173 = vector.extract_strided_slice %171 {offsets = [0, 0], sizes = [1, 32], strides = [1, 1]} : vector<1x128xf32> to vector<1x32xf32>
    %174 = vector.extract_strided_slice %171 {offsets = [0, 32], sizes = [1, 32], strides = [1, 1]} : vector<1x128xf32> to vector<1x32xf32>
    %175 = vector.extract_strided_slice %172 {offsets = [0, 64], sizes = [1, 32], strides = [1, 1]} : vector<1x128xf32> to vector<1x32xf32>
    %176 = vector.extract_strided_slice %171 {offsets = [0, 96], sizes = [1, 32], strides = [1, 1]} : vector<1x128xf32> to vector<1x32xf32>
    %177 = arith.mulf %174, %158 : vector<1x32xf32>
    %178 = arith.mulf %173, %175 : vector<1x32xf32>
    %179 = arith.addf %177, %178 : vector<1x32xf32>
    %180 = math.tanh %179 : vector<1x32xf32>
    %181 = arith.mulf %176, %180 : vector<1x32xf32>
    %182 = arith.mulf %181, %4 : vector<1x32xf32>
    %cst_40 = arith.constant dense<0.000000e+00> : vector<1xf32>
    %183 = vector.multi_reduction <add>, %182, %cst_40 [1] : vector<1x32xf32> to vector<1xf32>
    %184 = vector.shape_cast %183 : vector<1xf32> to vector<1x1xf32>
    %185 = arith.addf %184, %5 : vector<1x1xf32>
    %c0_41 = arith.constant 0 : index
    %c0_42 = arith.constant 0 : index
    %186 = vector.load %arg2[%c0_41, %c0_42] : memref<1x1xf32, #tpu.memory_space<vmem>>, vector<1x1xf32>
    tpu.vector_store %arg2[%c0_41, %c0_42], %185 {strides = array<i32>} : memref<1x1xf32, #tpu.memory_space<vmem>>, vector<1x1xf32>,
    return
  }
}

</mosaic_0001>

<llo_original>
// kernel: lstm_forward.1
$region0: #{lstm_forward.1}
  #allocation0 [shape = 'u32[]', space=smem, size = 0x4, offset = 0x4, fixed_abs, tag = 'smem constant byte address 0x4 - core index']
  #allocation1 [shape = 'u32[72,128]{1,0:T(1,128)}', space=vmem, size = 0x9000, scoped, tag = 'internal scratch']
  %s0 = inlined_call_operand.vmem [shape: f32[8,1], index: 0, kind: input, shape index: {}]
  %s1 = inlined_call_operand.hbm [shape: f32[36,128], index: 1, kind: input, shape index: {}]
  %s2 = inlined_call_operand.hbm [shape: f32[1,1], index: 2, kind: output, shape index: {}]
  %s3 = sld [smem:[#allocation0]]
  $region22: #{lstm_forward.1} parent=0
    _
  %s5 = ssub.s32 1, %s3
  %s6 = scalar_select 0, %s5, %s3
  $region1: #{lstm_forward.1} parent=0
    #allocation2 [shape = 'u8[20480]{0}', space=vmem, size = 0x5000, scoped, tag = 'input window, operand 1, single buffered']
    #allocation3 [shape = 's32[1]{0}', space=sflag, size = 0x4, scoped, tag = 'scoped memory for lstm_forward.1']
    #allocation4 [shape = 's32[1]{0}', space=sflag, size = 0x4, scoped, tag = 'scoped memory for lstm_forward.1']
    #allocation5 [shape = 'u8[512]{0}', space=vmem, size = 0x400, scoped, tag = 'output window, operand 0, single buffered']
    %7 = vsyncpa [#allocation3], 0
    %8 = vsyncpa [#allocation4], 0
    // Predicated region
    $region2: #{lstm_forward.1} parent=1 // pred_check
      _
    $region3: #{lstm_forward.1} parent=1 // pred_check_branch
      %10 = sbr.rel (0) target = $region5
    $region4: #{lstm_forward.1} parent=1 // pred_region
      _
    $region5: #{lstm_forward.1} parent=1 // pred_fallthru
      _
    // Predicated region
    $region6: #{lstm_forward.1} parent=1 // pred_check
      _
    $region7: #{lstm_forward.1} parent=1 // pred_check_branch
      %12 = sbr.rel (0) target = $region9
    $region8: #{lstm_forward.1} parent=1 // pred_region
      %14 = vsyncadd [#allocation3], 0
      %s15 = sshll.u32 %s1, 4
      %s16 = int_to_ptr.hbm [resolvable:$true] %s15
      %s17 = sshll.u32 [#allocation2], 4
      %s18 = int_to_ptr.vmem [resolvable:$true] %s17
      %23 = dma.hbm_to_vmem [thread:$0]  %s16, 640, %s18, [#allocation3], 128, 128, 8
    $region9: #{lstm_forward.1} parent=1 // pred_fallthru
      _
    // Predicated region
    $region10: #{lstm_forward.1} parent=1 // pred_check
      _
    $region11: #{lstm_forward.1} parent=1 // pred_check_branch
      %25 = sbr.rel (0) target = $region13
    $region12: #{lstm_forward.1} parent=1 // pred_region
      %27 = dma.done [#allocation3], 640
    $region13: #{lstm_forward.1} parent=1 // pred_fallthru
      _
    %v29 = vld [vmem:[#allocation2] sm:$0xff]
    %v30 = vld [vmem:[#allocation2 + $0x8] sm:$0xff]
    %v31 = vld [vmem:[#allocation2 + $0x10] sm:$0xff]
    %v32 = vld [vmem:[#allocation2 + $0x18] sm:$0xff]
    %v33 = vpack.c.bf16 %v30, %v29
    %v34 = vpack.c.bf16 %v32, %v31
    %v35 = vld [vmem:[#allocation2 + $0x20] sm:$0x1]
    %v36 = vld [vmem:[#allocation2 + $0x21] sm:$0x1]
    %v37 = vld [vmem:[#allocation2 + $0x22] sm:$0x1]
    %v38 = vld [vmem:[#allocation2 + $0x23] sm:$0x1]
    %v39 = vld [vmem:[%s0] sm:$0xff]
    %41 = vset.pattern.permute.xlu0 0
    %42 = vperm.xlu0 %41, %v39
    %v43 = vpop.permute.xlu0 %42
    %v45 = vperm.slane %v35, 0
    %v46 = vmul.f32 %v43, %v45
    %v47 = vperm.slane %v36, 0
    %v48 = vadd.f32 %v46, %v47
    %vm49 = vcmask 261120
    %v51 = vsel %vm49, 0, 0
    %53 = vmatpush.bf16.msra.mxu0 0
    %54 = vmatpush.bf16.msra.mxu0 0
    %55 = vmatpush.bf16.msra.mxu0 0
    %56 = vmatpush.bf16.msra.mxu0 0
    %57 = vmatpush.bf16.msra.mxu0 0
    %58 = vmatpush.bf16.msra.mxu0 0
    %59 = vmatpush.bf16.msra.mxu0 %v34
    %60 = vmatpush.bf16.msra.mxu0 %v33
    %61 = vmatmul.bf16.gmra.mxu0 %v51
    %v62 = vpop.f32.mrf.mxu0
    %v63 = vadd.f32 0.0, %v62
    %v64 = vpop.f32.mrf.mxu0
    %65 = vdwg.mxu0
    %v66 = vadd.f32 %v48, %v63
    %v67 = vmul.f32 %v66, 0.5
    %v68 = vtanh.pop %v67
    %v69 = vmul.f32 %v68, 0.5
    %v70 = vadd.f32 %v69, 0.5
    %v71 = vtanh.pop %v66
    %v72 = vmul.f32 %v70, 0.0
    %74 = vrot.lane.b32.xlu0 %v71, 64
    %v75 = vpop.permute.xlu0 %74
    %v77 = vmul.f32 %v70, %v75
    %79 = vrot.lane.b32.xlu0 %v77, 32
    %v80 = vpop.permute.xlu0 %79
    %v82 = vadd.f32 %v72, %v80
    %v83 = vtanh.pop %v82
    %85 = vrot.lane.b32.xlu0 %v83, 64
    %v86 = vpop.permute.xlu0 %85
    %v88 = vmul.f32 %v70, %v86
    %v89 = vpack.c.bf16 %v88, %v88
    %91 = vrot.lane.b32.xlu0 %v89, 32
    %v92 = vpop.permute.xlu0 %91
    %v94 = vsel %vm49, %v92, 0
    %96 = vmatpush.bf16.msra.mxu0 0
    %97 = vmatpush.bf16.msra.mxu0 0
    %98 = vmatpush.bf16.msra.mxu0 0
    %99 = vmatpush.bf16.msra.mxu0 0
    %100 = vmatpush.bf16.msra.mxu0 0
    %101 = vmatpush.bf16.msra.mxu0 0
    %102 = vmatpush.bf16.msra.mxu0 %v34
    %103 = vmatpush.bf16.msra.mxu0 %v33
    %104 = vmatmul.bf16.gmra.mxu0 %v94
    %v105 = vpop.f32.mrf.mxu0
    %v106 = vadd.f32 0.0, %v105
    %v107 = vpop.f32.mrf.mxu0
    %108 = vdwg.mxu0
    %v110 = vrot.slane %v106, 7
    %v112 = vadd.f32 %v48, %v110
    %v113 = vmul.f32 %v112, 0.5
    %v114 = vtanh.pop %v113
    %v115 = vmul.f32 %v114, 0.5
    %v116 = vadd.f32 %v115, 0.5
    %v117 = vtanh.pop %v112
    %v119 = vrot.slane %v82, 7
    %v121 = vmul.f32 %v116, %v119
    %123 = vrot.lane.b32.xlu0 %v117, 64
    %v124 = vpop.permute.xlu0 %123
    %v126 = vmul.f32 %v116, %v124
    %128 = vrot.lane.b32.xlu0 %v126, 32
    %v129 = vpop.permute.xlu0 %128
    %v131 = vadd.f32 %v121, %v129
    %v132 = vtanh.pop %v131
    %134 = vrot.lane.b32.xlu0 %v132, 64
    %v135 = vpop.permute.xlu0 %134
    %v137 = vmul.f32 %v116, %v135
    %v138 = vpack.c.bf16 %v137, %v137
    %v140 = vshrl.u32 %v138, 16
    %142 = vrot.lane.b32.xlu0 %v140, 32
    %v143 = vpop.permute.xlu0 %142
    %v145 = vsel %vm49, %v143, 0
    %147 = vmatpush.bf16.msra.mxu0 0
    %148 = vmatpush.bf16.msra.mxu0 0
    %149 = vmatpush.bf16.msra.mxu0 0
    %150 = vmatpush.bf16.msra.mxu0 0
    %151 = vmatpush.bf16.msra.mxu0 0
    %152 = vmatpush.bf16.msra.mxu0 0
    %153 = vmatpush.bf16.msra.mxu0 %v34
    %154 = vmatpush.bf16.msra.mxu0 %v33
    %155 = vmatmul.bf16.gmra.mxu0 %v145
    %v156 = vpop.f32.mrf.mxu0
    %v157 = vadd.f32 0.0, %v156
    %v158 = vpop.f32.mrf.mxu0
    %159 = vdwg.mxu0
    %v161 = vrot.slane %v157, 6
    %v163 = vadd.f32 %v48, %v161
    %v164 = vmul.f32 %v163, 0.5
    %v165 = vtanh.pop %v164
    %v166 = vmul.f32 %v165, 0.5
    %v167 = vadd.f32 %v166, 0.5
    %v168 = vtanh.pop %v163
    %v170 = vrot.slane %v131, 7
    %v172 = vmul.f32 %v167, %v170
    %174 = vrot.lane.b32.xlu0 %v168, 64
    %v175 = vpop.permute.xlu0 %174
    %v177 = vmul.f32 %v167, %v175
    %179 = vrot.lane.b32.xlu0 %v177, 32
    %v180 = vpop.permute.xlu0 %179
    %v182 = vadd.f32 %v172, %v180
    %v183 = vtanh.pop %v182
    %185 = vrot.lane.b32.xlu0 %v183, 64
    %v186 = vpop.permute.xlu0 %185
    %v188 = vmul.f32 %v167, %v186
    %v189 = vpack.c.bf16 %v188, %v188
    %v191 = vrot.slane %v189, 1
    %192 = vrot.lane.b32.xlu0 %v191, 32
    %v193 = vpop.permute.xlu0 %192
    %v195 = vsel %vm49, %v193, 0
    %197 = vmatpush.bf16.msra.mxu0 0
    %198 = vmatpush.bf16.msra.mxu0 0
    %199 = vmatpush.bf16.msra.mxu0 0
    %200 = vmatpush.bf16.msra.mxu0 0
    %201 = vmatpush.bf16.msra.mxu0 0
    %202 = vmatpush.bf16.msra.mxu0 0
    %203 = vmatpush.bf16.msra.mxu0 %v34
    %204 = vmatpush.bf16.msra.mxu0 %v33
    %205 = vmatmul.bf16.gmra.mxu0 %v195
    %v206 = vpop.f32.mrf.mxu0
    %v207 = vadd.f32 0.0, %v206
    %v208 = vpop.f32.mrf.mxu0
    %209 = vdwg.mxu0
    %v211 = vrot.slane %v207, 5
    %v213 = vadd.f32 %v48, %v211
    %v214 = vmul.f32 %v213, 0.5
    %v215 = vtanh.pop %v214
    %v216 = vmul.f32 %v215, 0.5
    %v217 = vadd.f32 %v216, 0.5
    %v218 = vtanh.pop %v213
    %v220 = vrot.slane %v182, 7
    %v222 = vmul.f32 %v217, %v220
    %224 = vrot.lane.b32.xlu0 %v218, 64
    %v225 = vpop.permute.xlu0 %224
    %v227 = vmul.f32 %v217, %v225
    %229 = vrot.lane.b32.xlu0 %v227, 32
    %v230 = vpop.permute.xlu0 %229
    %v232 = vadd.f32 %v222, %v230
    %v233 = vtanh.pop %v232
    %235 = vrot.lane.b32.xlu0 %v233, 64
    %v236 = vpop.permute.xlu0 %235
    %v238 = vmul.f32 %v217, %v236
    %v239 = vpack.c.bf16 %v238, %v238
    %v241 = vshrl.u32 %v239, 16
    %v243 = vrot.slane %v241, 1
    %244 = vrot.lane.b32.xlu0 %v243, 32
    %v245 = vpop.permute.xlu0 %244
    %v247 = vsel %vm49, %v245, 0
    %249 = vmatpush.bf16.msra.mxu0 0
    %250 = vmatpush.bf16.msra.mxu0 0
    %251 = vmatpush.bf16.msra.mxu0 0
    %252 = vmatpush.bf16.msra.mxu0 0
    %253 = vmatpush.bf16.msra.mxu0 0
    %254 = vmatpush.bf16.msra.mxu0 0
    %255 = vmatpush.bf16.msra.mxu0 %v34
    %256 = vmatpush.bf16.msra.mxu0 %v33
    %257 = vmatmul.bf16.gmra.mxu0 %v247
    %v258 = vpop.f32.mrf.mxu0
    %v259 = vadd.f32 0.0, %v258
    %v260 = vpop.f32.mrf.mxu0
    %261 = vdwg.mxu0
    %v263 = vrot.slane %v259, 4
    %v265 = vadd.f32 %v48, %v263
    %v266 = vmul.f32 %v265, 0.5
    %v267 = vtanh.pop %v266
    %v268 = vmul.f32 %v267, 0.5
    %v269 = vadd.f32 %v268, 0.5
    %v270 = vtanh.pop %v265
    %v272 = vrot.slane %v232, 7
    %v274 = vmul.f32 %v269, %v272
    %276 = vrot.lane.b32.xlu0 %v270, 64
    %v277 = vpop.permute.xlu0 %276
    %v279 = vmul.f32 %v269, %v277
    %281 = vrot.lane.b32.xlu0 %v279, 32
    %v282 = vpop.permute.xlu0 %281
    %v284 = vadd.f32 %v274, %v282
    %v285 = vtanh.pop %v284
    %287 = vrot.lane.b32.xlu0 %v285, 64
    %v288 = vpop.permute.xlu0 %287
    %v290 = vmul.f32 %v269, %v288
    %v291 = vpack.c.bf16 %v290, %v290
    %v293 = vrot.slane %v291, 2
    %294 = vrot.lane.b32.xlu0 %v293, 32
    %v295 = vpop.permute.xlu0 %294
    %v297 = vsel %vm49, %v295, 0
    %299 = vmatpush.bf16.msra.mxu0 0
    %300 = vmatpush.bf16.msra.mxu0 0
    %301 = vmatpush.bf16.msra.mxu0 0
    %302 = vmatpush.bf16.msra.mxu0 0
    %303 = vmatpush.bf16.msra.mxu0 0
    %304 = vmatpush.bf16.msra.mxu0 0
    %305 = vmatpush.bf16.msra.mxu0 %v34
    %306 = vmatpush.bf16.msra.mxu0 %v33
    %307 = vmatmul.bf16.gmra.mxu0 %v297
    %v308 = vpop.f32.mrf.mxu0
    %v309 = vadd.f32 0.0, %v308
    %v310 = vpop.f32.mrf.mxu0
    %311 = vdwg.mxu0
    %v313 = vrot.slane %v309, 3
    %v315 = vadd.f32 %v48, %v313
    %v316 = vmul.f32 %v315, 0.5
    %v317 = vtanh.pop %v316
    %v318 = vmul.f32 %v317, 0.5
    %v319 = vadd.f32 %v318, 0.5
    %v320 = vtanh.pop %v315
    %v322 = vrot.slane %v284, 7
    %v324 = vmul.f32 %v319, %v322
    %326 = vrot.lane.b32.xlu0 %v320, 64
    %v327 = vpop.permute.xlu0 %326
    %v329 = vmul.f32 %v319, %v327
    %331 = vrot.lane.b32.xlu0 %v329, 32
    %v332 = vpop.permute.xlu0 %331
    %v334 = vadd.f32 %v324, %v332
    %v335 = vtanh.pop %v334
    %337 = vrot.lane.b32.xlu0 %v335, 64
    %v338 = vpop.permute.xlu0 %337
    %v340 = vmul.f32 %v319, %v338
    %v341 = vpack.c.bf16 %v340, %v340
    %v343 = vshrl.u32 %v341, 16
    %v345 = vrot.slane %v343, 2
    %346 = vrot.lane.b32.xlu0 %v345, 32
    %v347 = vpop.permute.xlu0 %346
    %v349 = vsel %vm49, %v347, 0
    %351 = vmatpush.bf16.msra.mxu0 0
    %352 = vmatpush.bf16.msra.mxu0 0
    %353 = vmatpush.bf16.msra.mxu0 0
    %354 = vmatpush.bf16.msra.mxu0 0
    %355 = vmatpush.bf16.msra.mxu0 0
    %356 = vmatpush.bf16.msra.mxu0 0
    %357 = vmatpush.bf16.msra.mxu0 %v34
    %358 = vmatpush.bf16.msra.mxu0 %v33
    %359 = vmatmul.bf16.gmra.mxu0 %v349
    %v360 = vpop.f32.mrf.mxu0
    %v361 = vadd.f32 0.0, %v360
    %v362 = vpop.f32.mrf.mxu0
    %363 = vdwg.mxu0
    %v365 = vrot.slane %v361, 2
    %v367 = vadd.f32 %v48, %v365
    %v368 = vmul.f32 %v367, 0.5
    %v369 = vtanh.pop %v368
    %v370 = vmul.f32 %v369, 0.5
    %v371 = vadd.f32 %v370, 0.5
    %v372 = vtanh.pop %v367
    %v374 = vrot.slane %v334, 7
    %v376 = vmul.f32 %v371, %v374
    %378 = vrot.lane.b32.xlu0 %v372, 64
    %v379 = vpop.permute.xlu0 %378
    %v381 = vmul.f32 %v371, %v379
    %383 = vrot.lane.b32.xlu0 %v381, 32
    %v384 = vpop.permute.xlu0 %383
    %v386 = vadd.f32 %v376, %v384
    %v387 = vtanh.pop %v386
    %389 = vrot.lane.b32.xlu0 %v387, 64
    %v390 = vpop.permute.xlu0 %389
    %v392 = vmul.f32 %v371, %v390
    %v393 = vpack.c.bf16 %v392, %v392
    %v395 = vrot.slane %v393, 3
    %396 = vrot.lane.b32.xlu0 %v395, 32
    %v397 = vpop.permute.xlu0 %396
    %v399 = vsel %vm49, %v397, 0
    %401 = vmatpush.bf16.msra.mxu0 0
    %402 = vmatpush.bf16.msra.mxu0 0
    %403 = vmatpush.bf16.msra.mxu0 0
    %404 = vmatpush.bf16.msra.mxu0 0
    %405 = vmatpush.bf16.msra.mxu0 0
    %406 = vmatpush.bf16.msra.mxu0 0
    %407 = vmatpush.bf16.msra.mxu0 %v34
    %408 = vmatpush.bf16.msra.mxu0 %v33
    %409 = vmatmul.bf16.gmra.mxu0 %v399
    %v410 = vpop.f32.mrf.mxu0
    %v411 = vadd.f32 0.0, %v410
    %v412 = vpop.f32.mrf.mxu0
    %413 = vdwg.mxu0
    %v415 = vrot.slane %v411, 1
    %v417 = vadd.f32 %v48, %v415
    %v418 = vmul.f32 %v417, 0.5
    %v419 = vtanh.pop %v418
    %v420 = vmul.f32 %v419, 0.5
    %v421 = vadd.f32 %v420, 0.5
    %v422 = vtanh.pop %v417
    %v424 = vrot.slane %v386, 7
    %v426 = vmul.f32 %v421, %v424
    %428 = vrot.lane.b32.xlu0 %v422, 64
    %v429 = vpop.permute.xlu0 %428
    %v431 = vmul.f32 %v421, %v429
    %433 = vrot.lane.b32.xlu0 %v431, 32
    %v434 = vpop.permute.xlu0 %433
    %v436 = vadd.f32 %v426, %v434
    %v437 = vtanh.pop %v436
    %439 = vrot.lane.b32.xlu0 %v437, 64
    %v440 = vpop.permute.xlu0 %439
    %v442 = vmul.f32 %v421, %v440
    %v444 = vrot.slane %v37, 1
    %445 = vrot.lane.b32.xlu0 %v444, 96
    %v446 = vpop.permute.xlu0 %445
    %v448 = vmul.f32 %v442, %v446
    %450 = vrot.lane.b32.xlu0 %v448, 32
    %v451 = vpop.permute.xlu0 %450
    %vm453 = vcmask 261127
    %v454 = vsel %vm453, %v451, 0.0
    %455 = vadd.xlane.f32.xlu0 %v454
    %v456 = vpop.xlane.xlu0 %455
    %v458 = vrot.slane %v38, 1
    %v460 = vadd.f32 %v456, %v458
    %vm461 = vcmask 7175
    %462 = vst.msk [vmem:[#allocation5 - $0x7] sm:$0x80] %vm461, %v460
    // Predicated region
    $region14: #{lstm_forward.1} parent=1 // pred_check
      _
    $region15: #{lstm_forward.1} parent=1 // pred_check_branch
      %464 = sbr.rel (0) target = $region17
    $region16: #{lstm_forward.1} parent=1 // pred_region
      %466 = vsyncadd [#allocation4], 0
      %s468 = sshll.u32 [#allocation5], 4
      %s469 = int_to_ptr.vmem [resolvable:$true] %s468
      %s470 = sshll.u32 %s2, 4
      %s471 = int_to_ptr.hbm [resolvable:$true] %s470
      %473 = dma.vmem_to_hbm [thread:$0]  %s469, 16, %s471, [#allocation4]
    $region17: #{lstm_forward.1} parent=1 // pred_fallthru
      _
    // Predicated region
    $region18: #{lstm_forward.1} parent=1 // pred_check
      _
    $region19: #{lstm_forward.1} parent=1 // pred_check_branch
      %475 = sbr.rel (0) target = $region21
    $region20: #{lstm_forward.1} parent=1 // pred_region
      %477 = dma.done [#allocation4], 16
    $region21: #{lstm_forward.1} parent=1 // pred_fallthru
      _
    %478 = vsyncpa [#allocation3], 1
    %479 = vsyncpa [#allocation4], 1

</llo_original>
